<compile_context>
chip_gen: v6e
topology: v6e:2x2x1
jax: 0.10.0
libtpu: 0.0.40
codegen_flags: <defaults>
</compile_context>

<pallas_src>
import math

import jax
import jax.numpy as jnp
from jax.experimental import pallas as pl
from jax.experimental.pallas import tpu as pltpu

DEG2RAD = math.pi / 180.0
_LANE = 128
_WIDE_W = 1024  # lane-dense slab width for large inputs (8 vregs wide)

# Taylor coefficients for sin/cos on the reduced range |r| <= pi/4.
_S1, _S2, _S3, _S4 = -1.0 / 6.0, 1.0 / 120.0, -1.0 / 5040.0, 1.0 / 362880.0
_C1, _C2, _C3, _C4 = -0.5, 1.0 / 24.0, -1.0 / 720.0, 1.0 / 40320.0


def _cdiv(a, b):
    return -(-a // b)


def _round_up(x, m):
    return _cdiv(x, m) * m


def _sin_cos_from_degrees(x_deg):
    """Shared range reduction: sin(x deg) and cos(x deg) from one reduction."""
    x = x_deg.astype(jnp.float32)
    k = jnp.round(x * (1.0 / 90.0))          # nearest quadrant
    r = (x - k * 90.0) * DEG2RAD             # |r| <= pi/4 (radians)
    r2 = r * r
    s = r * (1.0 + r2 * (_S1 + r2 * (_S2 + r2 * (_S3 + r2 * _S4))))
    c = 1.0 + r2 * (_C1 + r2 * (_C2 + r2 * (_C3 + r2 * _C4)))
    q = k.astype(jnp.int32) & 3              # quadrant in {0,1,2,3}
    swap = (q & 1) != 0
    sin_base = jnp.where(swap, c, s)
    cos_base = jnp.where(swap, s, c)
    sin_x = jnp.where((q & 2) != 0, -sin_base, sin_base)
    cos_x = jnp.where(((q + 1) & 2) != 0, -cos_base, cos_base)
    return sin_x, cos_x


def _lossfunc_kernel(pred_ref, label_ref,
                     psin_ref, pcos_ref, lsin_ref, lcos_ref):
    ps, pc = _sin_cos_from_degrees(pred_ref[...])
    ls, lc = _sin_cos_from_degrees(label_ref[...])
    psin_ref[...] = ps.astype(psin_ref.dtype)
    pcos_ref[...] = pc.astype(pcos_ref.dtype)
    lsin_ref[...] = ls.astype(lsin_ref.dtype)
    lcos_ref[...] = lc.astype(lcos_ref.dtype)


def _vmem_budget_bytes():
    """(block budget, vmem_limit) from the chip's actual VMEM capacity."""
    cap = None
    try:
        cap = getattr(pltpu.get_tpu_info(), "vmem_capacity_bytes", None)
    except Exception:
        cap = None
    if not cap:
        cap = 64 * 1024 * 1024  # conservative: v7x per-TC VMEM
    limit = max(16 * 1024 * 1024, min(cap * 3 // 4, cap - 8 * 1024 * 1024))
    block_budget = limit * 2 // 3
    return block_budget, limit


def _pick_width(n):
    return _WIDE_W if n >= _WIDE_W else _LANE


def _choose_tile_rows(rows, per_row_bytes, block_budget, row_align):
    """Rows per block: under VMEM budget, sublane-aligned, even step count."""
    if rows <= row_align:
        return rows  # single block equal to the full (small) array
    max_rows = max(row_align,
                   (block_budget // per_row_bytes) // row_align * row_align)
    # Target: at least 2 steps (feed both v7x TensorCores), even when > 1.
    steps = max(2, _cdiv(rows, max_rows))
    if steps % 2:
        steps += 1
    tile_rows = min(_round_up(_cdiv(rows, steps), row_align),
                    _round_up(rows, row_align))
    # Rounding up can drop a step; keep the realized step count even.
    for _ in range(4):
        realized = _cdiv(rows, tile_rows)
        if realized <= 1 or realized % 2 == 0 or tile_rows <= row_align:
            break
        tile_rows -= row_align
    return tile_rows


def loss_func_forward(pred, label, *, out_dtype=None):
    """Pallas implementation of LossFunc.forward's compute.

    pred, label: float arrays (degrees) of identical shape (any rank).
    Returns (pred_sin, pred_cos, label_sin, label_cos), same shape as inputs.
    out_dtype: output dtype; jnp.bfloat16 is strongly encouraged for large
      arrays (halves write bandwidth); math is always done in float32.
    """
    assert pred.shape == label.shape, "pred/label shapes must match"
    out_dtype = pred.dtype if out_dtype is None else jnp.dtype(out_dtype)

    orig_shape = pred.shape
    n = int(pred.size)

    # --- Lane-dense repack: flatten -> (rows, W) with W a multiple of 128 ---
    width = _pick_width(n)
    rows = _cdiv(n, width)
    padded = rows * width
    pflat = pred.reshape(-1)
    lflat = label.reshape(-1)
    if padded != n:
        pflat = jnp.pad(pflat, (0, padded - n))
        lflat = jnp.pad(lflat, (0, padded - n))
    p2 = pflat.reshape(rows, width)
    l2 = lflat.reshape(rows, width)

    in_item = jnp.dtype(pred.dtype).itemsize
    out_item = jnp.dtype(out_dtype).itemsize
    row_align = 16 if (in_item < 4 or out_item < 4) else 8

    block_budget, vmem_limit = _vmem_budget_bytes()
    # 2 inputs + 4 outputs, double-buffered, per-stream itemsizes.
    per_row_bytes = 2 * width * (2 * in_item + 4 * out_item)
    tile_rows = _choose_tile_rows(rows, per_row_bytes, block_budget, row_align)

    grid = (_cdiv(rows, tile_rows),)
    spec = pl.BlockSpec((tile_rows, width), lambda i: (i, 0))
    out_sds = jax.ShapeDtypeStruct((rows, width), out_dtype)

    outs = pl.pallas_call(
        _lossfunc_kernel,
        grid=grid,
        in_specs=[spec, spec],
        out_specs=(spec, spec, spec, spec),
        out_shape=(out_sds, out_sds, out_sds, out_sds),
        compiler_params=pltpu.CompilerParams(
            dimension_semantics=("parallel",),
            vmem_limit_bytes=vmem_limit,
        ),
    )(p2, l2)

    def _restore(o):
        if padded != n:
            o = o.reshape(-1)[:n]
        return o.reshape(orig_shape)

    return tuple(_restore(o) for o in outs)


def _reference(pred, label):
    rp = pred.astype(jnp.float32) * DEG2RAD
    rl = label.astype(jnp.float32) * DEG2RAD
    return jnp.sin(rp), jnp.cos(rp), jnp.sin(rl), jnp.cos(rl)


if __name__ == "__main__":
    key = jax.random.PRNGKey(0)
    k1, k2 = jax.random.split(key)
    # Angles in degrees; small, deliberately non-128-aligned shape to exercise
    # the lane-dense repack + ragged-tail padding path.
    pred = jax.random.uniform(k1, (8, 45), jnp.float32, -180.0, 180.0)
    label = jax.random.uniform(k2, (8, 45), jnp.float32, -180.0, 180.0)

    refs = _reference(pred, label)

    # Default (f32) outputs: tight tolerance vs the jnp reference.
    outs = jax.block_until_ready(loss_func_forward(pred, label))
    for o, r in zip(outs, refs):
        assert o.shape == r.shape
        assert jnp.allclose(o, r, atol=1e-5, rtol=1e-5), "f32 mismatch"

    # bf16 outputs (bandwidth-saving path): looser tolerance.
    outs_bf16 = jax.block_until_ready(
        loss_func_forward(pred, label, out_dtype=jnp.bfloat16))
    for o, r in zip(outs_bf16, refs):
        assert jnp.allclose(o.astype(jnp.float32), r, atol=1e-2, rtol=1e-2), \
            "bf16 mismatch"

    print("KERNEL_OK")
</pallas_src>

<mosaic_0001>
module attributes {stable_mosaic.version = 11 : i64} {
  func.func @_lossfunc_kernel(%arg0: i32, %arg1: memref<3x128xf32, #tpu.memory_space<vmem>>, %arg2: memref<3x128xf32, #tpu.memory_space<vmem>>, %arg3: memref<3x128xf32, #tpu.memory_space<vmem>>, %arg4: memref<3x128xf32, #tpu.memory_space<vmem>>, %arg5: memref<3x128xf32, #tpu.memory_space<vmem>>, %arg6: memref<3x128xf32, #tpu.memory_space<vmem>>) attributes {dimension_semantics = [#tpu.dimension_semantics<parallel>], iteration_bounds = array<i64: 1>, scalar_prefetch = 0 : i64, scratch_operands = 0 : i64, tpu.core_type = #tpu.core_type<tc>, window_params = [{transform_indices = @transform_0, window_bounds = array<i64: 3, 128>}, {transform_indices = @transform_1, window_bounds = array<i64: 3, 128>}, {transform_indices = @transform_2, window_bounds = array<i64: 3, 128>}, {transform_indices = @transform_3, window_bounds = array<i64: 3, 128>}, {transform_indices = @transform_4, window_bounds = array<i64: 3, 128>}, {transform_indices = @transform_5, window_bounds = array<i64: 3, 128>}]} {
    %c0 = arith.constant 0 : index
    %c0_0 = arith.constant 0 : index
    %0 = vector.load %arg1[%c0, %c0_0] : memref<3x128xf32, #tpu.memory_space<vmem>>, vector<3x128xf32>
    %cst = arith.constant 0.0111111114 : f32
    %1 = vector.broadcast %cst : f32 to vector<3x128xf32>
    %2 = arith.mulf %0, %1 : vector<3x128xf32>
    %3 = math.roundeven %2 : vector<3x128xf32>
    %cst_1 = arith.constant 9.000000e+01 : f32
    %4 = vector.broadcast %cst_1 : f32 to vector<3x128xf32>
    %5 = arith.mulf %3, %4 : vector<3x128xf32>
    %6 = arith.subf %0, %5 : vector<3x128xf32>
    %cst_2 = arith.constant 0.0174532924 : f32
    %7 = vector.broadcast %cst_2 : f32 to vector<3x128xf32>
    %8 = arith.mulf %6, %7 : vector<3x128xf32>
    %9 = arith.mulf %8, %8 : vector<3x128xf32>
    %cst_3 = arith.constant 2.75573188E-6 : f32
    %10 = vector.broadcast %cst_3 : f32 to vector<3x128xf32>
    %11 = arith.mulf %9, %10 : vector<3x128xf32>
    %cst_4 = arith.constant -1.98412701E-4 : f32
    %12 = vector.broadcast %cst_4 : f32 to vector<3x128xf32>
    %13 = arith.addf %12, %11 : vector<3x128xf32>
    %14 = arith.mulf %9, %13 : vector<3x128xf32>
    %cst_5 = arith.constant 0.00833333377 : f32
    %15 = vector.broadcast %cst_5 : f32 to vector<3x128xf32>
    %16 = arith.addf %15, %14 : vector<3x128xf32>
    %17 = arith.mulf %9, %16 : vector<3x128xf32>
    %cst_6 = arith.constant -0.166666672 : f32
    %18 = vector.broadcast %cst_6 : f32 to vector<3x128xf32>
    %19 = arith.addf %18, %17 : vector<3x128xf32>
    %20 = arith.mulf %9, %19 : vector<3x128xf32>
    %cst_7 = arith.constant 1.000000e+00 : f32
    %21 = vector.broadcast %cst_7 : f32 to vector<3x128xf32>
    %22 = arith.addf %21, %20 : vector<3x128xf32>
    %23 = arith.mulf %8, %22 : vector<3x128xf32>
    %cst_8 = arith.constant 2.48015876E-5 : f32
    %24 = vector.broadcast %cst_8 : f32 to vector<3x128xf32>
    %25 = arith.mulf %9, %24 : vector<3x128xf32>
    %cst_9 = arith.constant -0.00138888892 : f32
    %26 = vector.broadcast %cst_9 : f32 to vector<3x128xf32>
    %27 = arith.addf %26, %25 : vector<3x128xf32>
    %28 = arith.mulf %9, %27 : vector<3x128xf32>
    %cst_10 = arith.constant 0.0416666679 : f32
    %29 = vector.broadcast %cst_10 : f32 to vector<3x128xf32>
    %30 = arith.addf %29, %28 : vector<3x128xf32>
    %31 = arith.mulf %9, %30 : vector<3x128xf32>
    %cst_11 = arith.constant -5.000000e-01 : f32
    %32 = vector.broadcast %cst_11 : f32 to vector<3x128xf32>
    %33 = arith.addf %32, %31 : vector<3x128xf32>
    %34 = arith.mulf %9, %33 : vector<3x128xf32>
    %cst_12 = arith.constant 1.000000e+00 : f32
    %35 = vector.broadcast %cst_12 : f32 to vector<3x128xf32>
    %36 = arith.addf %35, %34 : vector<3x128xf32>
    %37 = arith.fptosi %3 : vector<3x128xf32> to vector<3x128xi32>
    %c3_i32 = arith.constant 3 : i32
    %38 = vector.broadcast %c3_i32 : i32 to vector<3x128xi32>
    %39 = arith.andi %37, %38 : vector<3x128xi32>
    %c1_i32 = arith.constant 1 : i32
    %40 = vector.broadcast %c1_i32 : i32 to vector<3x128xi32>
    %41 = arith.andi %39, %40 : vector<3x128xi32>
    %c0_i32 = arith.constant 0 : i32
    %42 = vector.broadcast %c0_i32 : i32 to vector<3x128xi32>
    %43 = arith.cmpi ne, %41, %42 : vector<3x128xi32>
    %44 = arith.select %43, %36, %23 : vector<3x128xi1>, vector<3x128xf32>
    %45 = arith.select %43, %23, %36 : vector<3x128xi1>, vector<3x128xf32>
    %c2_i32 = arith.constant 2 : i32
    %46 = vector.broadcast %c2_i32 : i32 to vector<3x128xi32>
    %47 = arith.andi %39, %46 : vector<3x128xi32>
    %c0_i32_13 = arith.constant 0 : i32
    %48 = vector.broadcast %c0_i32_13 : i32 to vector<3x128xi32>
    %49 = arith.cmpi ne, %47, %48 : vector<3x128xi32>
    %cst_14 = arith.constant 0.000000e+00 : f32
    %50 = vector.broadcast %cst_14 : f32 to vector<3x128xf32>
    %51 = arith.subf %50, %44 : vector<3x128xf32>
    %52 = arith.select %49, %51, %44 : vector<3x128xi1>, vector<3x128xf32>
    %c1_i32_15 = arith.constant 1 : i32
    %53 = vector.broadcast %c1_i32_15 : i32 to vector<3x128xi32>
    %54 = arith.addi %39, %53 : vector<3x128xi32>
    %c2_i32_16 = arith.constant 2 : i32
    %55 = vector.broadcast %c2_i32_16 : i32 to vector<3x128xi32>
    %56 = arith.andi %54, %55 : vector<3x128xi32>
    %c0_i32_17 = arith.constant 0 : i32
    %57 = vector.broadcast %c0_i32_17 : i32 to vector<3x128xi32>
    %58 = arith.cmpi ne, %56, %57 : vector<3x128xi32>
    %cst_18 = arith.constant 0.000000e+00 : f32
    %59 = vector.broadcast %cst_18 : f32 to vector<3x128xf32>
    %60 = arith.subf %59, %45 : vector<3x128xf32>
    %61 = arith.select %58, %60, %45 : vector<3x128xi1>, vector<3x128xf32>
    %c0_19 = arith.constant 0 : index
    %c0_20 = arith.constant 0 : index
    %62 = vector.load %arg2[%c0_19, %c0_20] : memref<3x128xf32, #tpu.memory_space<vmem>>, vector<3x128xf32>
    %cst_21 = arith.constant 0.0111111114 : f32
    %63 = vector.broadcast %cst_21 : f32 to vector<3x128xf32>
    %64 = arith.mulf %62, %63 : vector<3x128xf32>
    %65 = math.roundeven %64 : vector<3x128xf32>
    %cst_22 = arith.constant 9.000000e+01 : f32
    %66 = vector.broadcast %cst_22 : f32 to vector<3x128xf32>
    %67 = arith.mulf %65, %66 : vector<3x128xf32>
    %68 = arith.subf %62, %67 : vector<3x128xf32>
    %cst_23 = arith.constant 0.0174532924 : f32
    %69 = vector.broadcast %cst_23 : f32 to vector<3x128xf32>
    %70 = arith.mulf %68, %69 : vector<3x128xf32>
    %71 = arith.mulf %70, %70 : vector<3x128xf32>
    %cst_24 = arith.constant 2.75573188E-6 : f32
    %72 = vector.broadcast %cst_24 : f32 to vector<3x128xf32>
    %73 = arith.mulf %71, %72 : vector<3x128xf32>
    %cst_25 = arith.constant -1.98412701E-4 : f32
    %74 = vector.broadcast %cst_25 : f32 to vector<3x128xf32>
    %75 = arith.addf %74, %73 : vector<3x128xf32>
    %76 = arith.mulf %71, %75 : vector<3x128xf32>
    %cst_26 = arith.constant 0.00833333377 : f32
    %77 = vector.broadcast %cst_26 : f32 to vector<3x128xf32>
    %78 = arith.addf %77, %76 : vector<3x128xf32>
    %79 = arith.mulf %71, %78 : vector<3x128xf32>
    %cst_27 = arith.constant -0.166666672 : f32
    %80 = vector.broadcast %cst_27 : f32 to vector<3x128xf32>
    %81 = arith.addf %80, %79 : vector<3x128xf32>
    %82 = arith.mulf %71, %81 : vector<3x128xf32>
    %cst_28 = arith.constant 1.000000e+00 : f32
    %83 = vector.broadcast %cst_28 : f32 to vector<3x128xf32>
    %84 = arith.addf %83, %82 : vector<3x128xf32>
    %85 = arith.mulf %70, %84 : vector<3x128xf32>
    %cst_29 = arith.constant 2.48015876E-5 : f32
    %86 = vector.broadcast %cst_29 : f32 to vector<3x128xf32>
    %87 = arith.mulf %71, %86 : vector<3x128xf32>
    %cst_30 = arith.constant -0.00138888892 : f32
    %88 = vector.broadcast %cst_30 : f32 to vector<3x128xf32>
    %89 = arith.addf %88, %87 : vector<3x128xf32>
    %90 = arith.mulf %71, %89 : vector<3x128xf32>
    %cst_31 = arith.constant 0.0416666679 : f32
    %91 = vector.broadcast %cst_31 : f32 to vector<3x128xf32>
    %92 = arith.addf %91, %90 : vector<3x128xf32>
    %93 = arith.mulf %71, %92 : vector<3x128xf32>
    %cst_32 = arith.constant -5.000000e-01 : f32
    %94 = vector.broadcast %cst_32 : f32 to vector<3x128xf32>
    %95 = arith.addf %94, %93 : vector<3x128xf32>
    %96 = arith.mulf %71, %95 : vector<3x128xf32>
    %cst_33 = arith.constant 1.000000e+00 : f32
    %97 = vector.broadcast %cst_33 : f32 to vector<3x128xf32>
    %98 = arith.addf %97, %96 : vector<3x128xf32>
    %99 = arith.fptosi %65 : vector<3x128xf32> to vector<3x128xi32>
    %c3_i32_34 = arith.constant 3 : i32
    %100 = vector.broadcast %c3_i32_34 : i32 to vector<3x128xi32>
    %101 = arith.andi %99, %100 : vector<3x128xi32>
    %c1_i32_35 = arith.constant 1 : i32
    %102 = vector.broadcast %c1_i32_35 : i32 to vector<3x128xi32>
    %103 = arith.andi %101, %102 : vector<3x128xi32>
    %c0_i32_36 = arith.constant 0 : i32
    %104 = vector.broadcast %c0_i32_36 : i32 to vector<3x128xi32>
    %105 = arith.cmpi ne, %103, %104 : vector<3x128xi32>
    %106 = arith.select %105, %98, %85 : vector<3x128xi1>, vector<3x128xf32>
    %107 = arith.select %105, %85, %98 : vector<3x128xi1>, vector<3x128xf32>
    %c2_i32_37 = arith.constant 2 : i32
    %108 = vector.broadcast %c2_i32_37 : i32 to vector<3x128xi32>
    %109 = arith.andi %101, %108 : vector<3x128xi32>
    %c0_i32_38 = arith.constant 0 : i32
    %110 = vector.broadcast %c0_i32_38 : i32 to vector<3x128xi32>
    %111 = arith.cmpi ne, %109, %110 : vector<3x128xi32>
    %cst_39 = arith.constant 0.000000e+00 : f32
    %112 = vector.broadcast %cst_39 : f32 to vector<3x128xf32>
    %113 = arith.subf %112, %106 : vector<3x128xf32>
    %114 = arith.select %111, %113, %106 : vector<3x128xi1>, vector<3x128xf32>
    %c1_i32_40 = arith.constant 1 : i32
    %115 = vector.broadcast %c1_i32_40 : i32 to vector<3x128xi32>
    %116 = arith.addi %101, %115 : vector<3x128xi32>
    %c2_i32_41 = arith.constant 2 : i32
    %117 = vector.broadcast %c2_i32_41 : i32 to vector<3x128xi32>
    %118 = arith.andi %116, %117 : vector<3x128xi32>
    %c0_i32_42 = arith.constant 0 : i32
    %119 = vector.broadcast %c0_i32_42 : i32 to vector<3x128xi32>
    %120 = arith.cmpi ne, %118, %119 : vector<3x128xi32>
    %cst_43 = arith.constant 0.000000e+00 : f32
    %121 = vector.broadcast %cst_43 : f32 to vector<3x128xf32>
    %122 = arith.subf %121, %107 : vector<3x128xf32>
    %123 = arith.select %120, %122, %107 : vector<3x128xi1>, vector<3x128xf32>
    %c0_44 = arith.constant 0 : index
    %c0_45 = arith.constant 0 : index
    %124 = vector.load %arg3[%c0_44, %c0_45] : memref<3x128xf32, #tpu.memory_space<vmem>>, vector<3x128xf32>
    tpu.vector_store %arg3[%c0_44, %c0_45], %52 {strides = array<i32>} : memref<3x128xf32, #tpu.memory_space<vmem>>, vector<3x128xf32>,
    %c0_46 = arith.constant 0 : index
    %c0_47 = arith.constant 0 : index
    %125 = vector.load %arg4[%c0_46, %c0_47] : memref<3x128xf32, #tpu.memory_space<vmem>>, vector<3x128xf32>
    tpu.vector_store %arg4[%c0_46, %c0_47], %61 {strides = array<i32>} : memref<3x128xf32, #tpu.memory_space<vmem>>, vector<3x128xf32>,
    %c0_48 = arith.constant 0 : index
    %c0_49 = arith.constant 0 : index
    %126 = vector.load %arg5[%c0_48, %c0_49] : memref<3x128xf32, #tpu.memory_space<vmem>>, vector<3x128xf32>
    tpu.vector_store %arg5[%c0_48, %c0_49], %114 {strides = array<i32>} : memref<3x128xf32, #tpu.memory_space<vmem>>, vector<3x128xf32>,
    %c0_50 = arith.constant 0 : index
    %c0_51 = arith.constant 0 : index
    %127 = vector.load %arg6[%c0_50, %c0_51] : memref<3x128xf32, #tpu.memory_space<vmem>>, vector<3x128xf32>
    tpu.vector_store %arg6[%c0_50, %c0_51], %123 {strides = array<i32>} : memref<3x128xf32, #tpu.memory_space<vmem>>, vector<3x128xf32>,
    return
  }
  func.func @transform_0(%arg0: i32) -> (i32, i32) {
    %c0_i32 = arith.constant 0 : i32
    %c0_i32_0 = arith.constant 0 : i32
    return %arg0, %c0_i32 : i32, i32
  }
  func.func @transform_1(%arg0: i32) -> (i32, i32) {
    %c0_i32 = arith.constant 0 : i32
    %c0_i32_0 = arith.constant 0 : i32
    return %arg0, %c0_i32 : i32, i32
  }
  func.func @transform_2(%arg0: i32) -> (i32, i32) {
    %c0_i32 = arith.constant 0 : i32
    %c0_i32_0 = arith.constant 0 : i32
    return %arg0, %c0_i32 : i32, i32
  }
  func.func @transform_3(%arg0: i32) -> (i32, i32) {
    %c0_i32 = arith.constant 0 : i32
    %c0_i32_0 = arith.constant 0 : i32
    return %arg0, %c0_i32 : i32, i32
  }
  func.func @transform_4(%arg0: i32) -> (i32, i32) {
    %c0_i32 = arith.constant 0 : i32
    %c0_i32_0 = arith.constant 0 : i32
    return %arg0, %c0_i32 : i32, i32
  }
  func.func @transform_5(%arg0: i32) -> (i32, i32) {
    %c0_i32 = arith.constant 0 : i32
    %c0_i32_0 = arith.constant 0 : i32
    return %arg0, %c0_i32 : i32, i32
  }
}

</mosaic_0001>

<llo_original>
// kernel: tpu_custom_call.1
$region0: #{tpu_custom_call.1}
  #allocation0 [shape = 'u32[]', space=smem, size = 0x4, offset = 0x4, fixed_abs, tag = 'smem constant byte address 0x4 - core index']
  #allocation1 [shape = 'u32[144,128]{1,0:T(1,128)}', space=vmem, size = 0x12000, scoped, tag = 'internal scratch']
  %s0 = inlined_call_operand.hbm [shape: f32[3,128], index: 0, kind: input, shape index: {}]
  %s1 = inlined_call_operand.hbm [shape: f32[3,128], index: 1, kind: input, shape index: {}]
  %s2 = inlined_call_operand.hbm [shape: f32[3,128], index: 2, kind: output, shape index: {0}]
  %s3 = inlined_call_operand.hbm [shape: f32[3,128], index: 3, kind: output, shape index: {1}]
  %s4 = inlined_call_operand.hbm [shape: f32[3,128], index: 4, kind: output, shape index: {2}]
  %s5 = inlined_call_operand.hbm [shape: f32[3,128], index: 5, kind: output, shape index: {3}]
  %6 = xla_tuple %s2, %s3, %s4, %s5
  %s7 = sld [smem:[#allocation0]]
  $region50: #{tpu_custom_call.1} parent=0
    _
  %s9 = ssub.s32 1, %s7
  %s10 = scalar_select 0, %s9, %s7
  $region1: #{tpu_custom_call.1} parent=0
    #allocation2 [shape = 'u8[2048]{0}', space=vmem, size = 0x800, scoped, tag = 'input window, operand 0, single buffered']
    #allocation3 [shape = 's32[1]{0}', space=sflag, size = 0x4, scoped, tag = 'scoped memory for tpu_custom_call.1']
    #allocation4 [shape = 's32[1]{0}', space=sflag, size = 0x4, scoped, tag = 'scoped memory for tpu_custom_call.1']
    #allocation5 [shape = 'u8[2048]{0}', space=vmem, size = 0x800, scoped, tag = 'input window, operand 1, single buffered']
    #allocation6 [shape = 's32[1]{0}', space=sflag, size = 0x4, scoped, tag = 'scoped memory for tpu_custom_call.1']
    #allocation7 [shape = 'u8[2048]{0}', space=vmem, size = 0x800, scoped, tag = 'output window, operand 0, single buffered']
    #allocation8 [shape = 'u8[2048]{0}', space=vmem, size = 0x800, scoped, tag = 'output window, operand 1, single buffered']
    #allocation9 [shape = 's32[1]{0}', space=sflag, size = 0x4, scoped, tag = 'scoped memory for tpu_custom_call.1']
    #allocation10 [shape = 'u8[2048]{0}', space=vmem, size = 0x800, scoped, tag = 'output window, operand 2, single buffered']
    #allocation11 [shape = 'u8[2048]{0}', space=vmem, size = 0x800, scoped, tag = 'output window, operand 3, single buffered']
    #allocation12 [shape = 's32[1]{0}', space=sflag, size = 0x4, scoped, tag = 'scoped memory for tpu_custom_call.1']
    %11 = vsyncpa [#allocation3], 0
    %12 = vsyncpa [#allocation6], 0
    %13 = vsyncpa [#allocation4], 0
    %14 = vsyncpa [#allocation9], 0
    %15 = vsyncpa [#allocation12], 0
    // Predicated region
    $region2: #{tpu_custom_call.1} parent=1 // pred_check
      _
    $region3: #{tpu_custom_call.1} parent=1 // pred_check_branch
      %17 = sbr.rel (0) target = $region5
    $region4: #{tpu_custom_call.1} parent=1 // pred_region
      %s19 = ssub.s32 64, 64
      %20 = vsyncadd [#allocation3], %s19
      %s22 = sshll.u32 [#allocation2], 4
      %s23 = int_to_ptr.vmem [resolvable:$true] %s22
      %25 = dma.hbm_to_vmem [thread:$0]  %s0, 64, %s23, [#allocation3]
    $region5: #{tpu_custom_call.1} parent=1 // pred_fallthru
      _
    // Predicated region
    $region6: #{tpu_custom_call.1} parent=1 // pred_check
      _
    $region7: #{tpu_custom_call.1} parent=1 // pred_check_branch
      %27 = sbr.rel (0) target = $region9
    $region8: #{tpu_custom_call.1} parent=1 // pred_region
      %s29 = ssub.s32 64, 64
      %30 = vsyncadd [#allocation6], %s29
      %s32 = sshll.u32 [#allocation5], 4
      %s33 = int_to_ptr.vmem [resolvable:$true] %s32
      %35 = dma.hbm_to_vmem [thread:$0]  %s1, 64, %s33, [#allocation6]
    $region9: #{tpu_custom_call.1} parent=1 // pred_fallthru
      _
    // Predicated region
    $region10: #{tpu_custom_call.1} parent=1 // pred_check
      _
    $region11: #{tpu_custom_call.1} parent=1 // pred_check_branch
      %37 = sbr.rel (0) target = $region13
    $region12: #{tpu_custom_call.1} parent=1 // pred_region
      %38 = dma.done [#allocation3], 64
    $region13: #{tpu_custom_call.1} parent=1 // pred_fallthru
      _
    // Predicated region
    $region14: #{tpu_custom_call.1} parent=1 // pred_check
      _
    $region15: #{tpu_custom_call.1} parent=1 // pred_check_branch
      %40 = sbr.rel (0) target = $region17
    $region16: #{tpu_custom_call.1} parent=1 // pred_region
      %41 = dma.done [#allocation6], 64
    $region17: #{tpu_custom_call.1} parent=1 // pred_fallthru
      _
    %v42 = vld [vmem:[#allocation2] sm:$0x7]
    %v43 = vmul.f32 %v42, 0.011111111
    %v44 = vround.ne.pseudo %v43
    %v45 = vmul.f32 %v44, 90.0
    %v46 = vsub.f32 %v42, %v45
    %v47 = vmul.f32 %v46, 0.017453292
    %v48 = vmul.f32 %v47, %v47
    %v49 = vmul.f32 %v48, 2.7557319e-06
    %v50 = vadd.f32 %v49, -0.0001984127
    %v51 = vmul.f32 %v48, %v50
    %v52 = vadd.f32 %v51, 0.008333334
    %v53 = vmul.f32 %v48, %v52
    %v54 = vadd.f32 %v53, -0.16666667
    %v55 = vmul.f32 %v48, %v54
    %v56 = vadd.f32 %v55, 1.0
    %v57 = vmul.f32 %v47, %v56
    %v58 = vmul.f32 %v48, 2.4801588e-05
    %v59 = vadd.f32 %v58, -0.0013888889
    %v60 = vmul.f32 %v48, %v59
    %v61 = vadd.f32 %v60, 0.041666668
    %v62 = vmul.f32 %v48, %v61
    %v63 = vadd.f32 %v62, -0.5
    %v64 = vmul.f32 %v48, %v63
    %v65 = vadd.f32 %v64, 1.0
    %v66 = vcvt.f32.s32.ties.to.even %v43
    %v67 = vand.u32 %v66, 3
    %v68 = vand.u32 %v67, 1
    %vm69 = vcmp.ne.s32.totalorder %v68, 0
    %v70 = vsel %vm69, %v65, %v57
    %v71 = vsel %vm69, %v57, %v65
    %v72 = vand.u32 %v67, 2
    %vm73 = vcmp.ne.s32.totalorder %v72, 0
    %v74 = vsub.f32 0.0, %v70
    %v75 = vsel %vm73, %v74, %v70
    %v76 = vadd.s32 %v67, 1
    %v77 = vand.u32 %v76, 2
    %vm78 = vcmp.ne.s32.totalorder %v77, 0
    %v79 = vsub.f32 0.0, %v71
    %v80 = vsel %vm78, %v79, %v71
    %v81 = vld [vmem:[#allocation5] sm:$0x7]
    %v82 = vmul.f32 %v81, 0.011111111
    %v83 = vround.ne.pseudo %v82
    %v84 = vmul.f32 %v83, 90.0
    %v85 = vsub.f32 %v81, %v84
    %v86 = vmul.f32 %v85, 0.017453292
    %v87 = vmul.f32 %v86, %v86
    %v88 = vmul.f32 %v87, 2.7557319e-06
    %v89 = vadd.f32 %v88, -0.0001984127
    %v90 = vmul.f32 %v87, %v89
    %v91 = vadd.f32 %v90, 0.008333334
    %v92 = vmul.f32 %v87, %v91
    %v93 = vadd.f32 %v92, -0.16666667
    %v94 = vmul.f32 %v87, %v93
    %v95 = vadd.f32 %v94, 1.0
    %v96 = vmul.f32 %v86, %v95
    %v97 = vmul.f32 %v87, 2.4801588e-05
    %v98 = vadd.f32 %v97, -0.0013888889
    %v99 = vmul.f32 %v87, %v98
    %v100 = vadd.f32 %v99, 0.041666668
    %v101 = vmul.f32 %v87, %v100
    %v102 = vadd.f32 %v101, -0.5
    %v103 = vmul.f32 %v87, %v102
    %v104 = vadd.f32 %v103, 1.0
    %v105 = vcvt.f32.s32.ties.to.even %v82
    %v106 = vand.u32 %v105, 3
    %v107 = vand.u32 %v106, 1
    %vm108 = vcmp.ne.s32.totalorder %v107, 0
    %v109 = vsel %vm108, %v104, %v96
    %v110 = vsel %vm108, %v96, %v104
    %v111 = vand.u32 %v106, 2
    %vm112 = vcmp.ne.s32.totalorder %v111, 0
    %v113 = vsub.f32 0.0, %v109
    %v114 = vsel %vm112, %v113, %v109
    %v115 = vadd.s32 %v106, 1
    %v116 = vand.u32 %v115, 2
    %vm117 = vcmp.ne.s32.totalorder %v116, 0
    %v118 = vsub.f32 0.0, %v110
    %v119 = vsel %vm117, %v118, %v110
    %120 = vst [vmem:[#allocation7] sm:$0x7] %v75
    %121 = vst [vmem:[#allocation8] sm:$0x7] %v80
    %122 = vst [vmem:[#allocation10] sm:$0x7] %v114
    %123 = vst [vmem:[#allocation11] sm:$0x7] %v119
    // Predicated region
    $region18: #{tpu_custom_call.1} parent=1 // pred_check
      _
    $region19: #{tpu_custom_call.1} parent=1 // pred_check_branch
      %125 = sbr.rel (0) target = $region21
    $region20: #{tpu_custom_call.1} parent=1 // pred_region
      %s127 = ssub.s32 64, 64
      %128 = vsyncadd [#allocation4], %s127
      %s130 = sshll.u32 [#allocation7], 4
      %s131 = int_to_ptr.vmem [resolvable:$true] %s130
      %133 = dma.vmem_to_hbm [thread:$0]  %s131, 64, %s2, [#allocation4]
    $region21: #{tpu_custom_call.1} parent=1 // pred_fallthru
      _
    // Predicated region
    $region22: #{tpu_custom_call.1} parent=1 // pred_check
      _
    $region23: #{tpu_custom_call.1} parent=1 // pred_check_branch
      %135 = sbr.rel (0) target = $region25
    $region24: #{tpu_custom_call.1} parent=1 // pred_region
      %s137 = ssub.s32 64, 64
      %138 = vsyncadd [#allocation9], %s137
      %s140 = sshll.u32 [#allocation8], 4
      %s141 = int_to_ptr.vmem [resolvable:$true] %s140
      %143 = dma.vmem_to_hbm [thread:$0]  %s141, 64, %s3, [#allocation9]
    $region25: #{tpu_custom_call.1} parent=1 // pred_fallthru
      _
    // Predicated region
    $region26: #{tpu_custom_call.1} parent=1 // pred_check
      _
    $region27: #{tpu_custom_call.1} parent=1 // pred_check_branch
      %145 = sbr.rel (0) target = $region29
    $region28: #{tpu_custom_call.1} parent=1 // pred_region
      %s147 = ssub.s32 64, 64
      %148 = vsyncadd [#allocation9], %s147
      %s150 = sshll.u32 [#allocation10], 4
      %s151 = int_to_ptr.vmem [resolvable:$true] %s150
      %153 = dma.vmem_to_hbm [thread:$0]  %s151, 64, %s4, [#allocation9]
    $region29: #{tpu_custom_call.1} parent=1 // pred_fallthru
      _
    // Predicated region
    $region30: #{tpu_custom_call.1} parent=1 // pred_check
      _
    $region31: #{tpu_custom_call.1} parent=1 // pred_check_branch
      %155 = sbr.rel (0) target = $region33
    $region32: #{tpu_custom_call.1} parent=1 // pred_region
      %s157 = ssub.s32 64, 64
      %158 = vsyncadd [#allocation12], %s157
      %s160 = sshll.u32 [#allocation11], 4
      %s161 = int_to_ptr.vmem [resolvable:$true] %s160
      %163 = dma.vmem_to_hbm [thread:$0]  %s161, 64, %s5, [#allocation12]
    $region33: #{tpu_custom_call.1} parent=1 // pred_fallthru
      _
    // Predicated region
    $region34: #{tpu_custom_call.1} parent=1 // pred_check
      _
    $region35: #{tpu_custom_call.1} parent=1 // pred_check_branch
      %165 = sbr.rel (0) target = $region37
    $region36: #{tpu_custom_call.1} parent=1 // pred_region
      %166 = dma.done [#allocation4], 64
    $region37: #{tpu_custom_call.1} parent=1 // pred_fallthru
      _
    // Predicated region
    $region38: #{tpu_custom_call.1} parent=1 // pred_check
      _
    $region39: #{tpu_custom_call.1} parent=1 // pred_check_branch
      %168 = sbr.rel (0) target = $region41
    $region40: #{tpu_custom_call.1} parent=1 // pred_region
      %169 = dma.done [#allocation9], 64
    $region41: #{tpu_custom_call.1} parent=1 // pred_fallthru
      _
    // Predicated region
    $region42: #{tpu_custom_call.1} parent=1 // pred_check
      _
    $region43: #{tpu_custom_call.1} parent=1 // pred_check_branch
      %171 = sbr.rel (0) target = $region45
    $region44: #{tpu_custom_call.1} parent=1 // pred_region
      %172 = dma.done [#allocation9], 64
    $region45: #{tpu_custom_call.1} parent=1 // pred_fallthru
      _
    // Predicated region
    $region46: #{tpu_custom_call.1} parent=1 // pred_check
      _
    $region47: #{tpu_custom_call.1} parent=1 // pred_check_branch
      %174 = sbr.rel (0) target = $region49
    $region48: #{tpu_custom_call.1} parent=1 // pred_region
      %175 = dma.done [#allocation12], 64
    $region49: #{tpu_custom_call.1} parent=1 // pred_fallthru
      _
    %176 = vsyncpa [#allocation3], 1
    %177 = vsyncpa [#allocation6], 1
    %178 = vsyncpa [#allocation4], 1
    %179 = vsyncpa [#allocation9], 1
    %180 = vsyncpa [#allocation12], 1

</llo_original>
